<compile_context>
chip_gen: v6e
topology: v6e:2x2x1
jax: 0.10.0
libtpu: 0.0.40
codegen_flags: <defaults>
</compile_context>

<pallas_src>
import functools

import jax
import jax.numpy as jnp
from jax.experimental import pallas as pl
from jax.experimental.pallas import tpu as pltpu


def _fc_kernel(x_ref, p_ref, o_ref, *, num_in, num_out):
    # x_ref: (TB, num_in)
    # p_ref: (TB, num_out*num_in + num_out)   -- per-sample [W_flat | b]
    # o_ref: (TB, num_out)
    tb = x_ref.shape[0]
    nw = num_out * num_in

    x = x_ref[...].astype(jnp.float32)                       # (TB, num_in)
    w_flat = p_ref[:, pl.ds(0, nw)].astype(jnp.float32)      # (TB, num_out*num_in)
    b = p_ref[:, pl.ds(nw, num_out)].astype(jnp.float32)     # (TB, num_out)

    # In-kernel (VMEM) regroup of the flat per-sample weights.
    w = w_flat.reshape(tb, num_out, num_in)                  # (TB, num_out, num_in)

    # Per-sample matvec on the VPU/XLU: broadcast x over num_out, multiply,
    # reduce over num_in.  f32 accumulation.
    y = jnp.sum(x[:, None, :] * w, axis=-1)                  # (TB, num_out)

    o_ref[...] = (y + b).astype(o_ref.dtype)


def _pick_tb(batch, param_size, itemsize, max_tb=None, target_bytes=4 << 20):
    """Largest batch tile whose per-step param block is ~target_bytes."""
    tb = max(1, target_bytes // (param_size * itemsize))
    if max_tb is not None:
        tb = min(tb, max_tb)
    tb = min(tb, batch)
    if tb >= 8:                    # keep sublanes full once we can afford it
        tb = (tb // 8) * 8
    return int(tb)


def fc_layer(x, param, num_in, num_out, *, max_tb=None):
    """Pallas implementation of FC_layer.forward."""
    B = x.shape[0]
    param_size = num_out * num_in + num_out
    assert x.shape == (B, num_in)
    assert param.shape == (B, param_size)

    tb = _pick_tb(B, param_size, jnp.dtype(param.dtype).itemsize, max_tb=max_tb)
    b_pad = ((B + tb - 1) // tb) * tb
    if b_pad != B:                 # ragged tail: zero-pad batch, slice result
        x = jnp.pad(x, ((0, b_pad - B), (0, 0)))
        param = jnp.pad(param, ((0, b_pad - B), (0, 0)))

    out = pl.pallas_call(
        functools.partial(_fc_kernel, num_in=num_in, num_out=num_out),
        out_shape=jax.ShapeDtypeStruct((b_pad, num_out), x.dtype),
        grid_spec=pltpu.PrefetchScalarGridSpec(
            num_scalar_prefetch=0,
            grid=(b_pad // tb,),
            in_specs=[
                pl.BlockSpec((tb, num_in), lambda i: (i, 0)),
                # Full param row block: weights + bias in one DMA, no wrapper copies.
                pl.BlockSpec((tb, param_size), lambda i: (i, 0)),
            ],
            out_specs=pl.BlockSpec((tb, num_out), lambda i: (i, 0)),
        ),
        compiler_params=pltpu.CompilerParams(
            dimension_semantics=("parallel",),      # shard batch blocks across TCs
            vmem_limit_bytes=48 * 1024 * 1024,      # > 32 MiB default, < 64 MiB (v7x)
        ),
    )(x, param)

    return out if b_pad == B else out[:B]


if __name__ == "__main__":
    num_in, num_out = 16, 8
    param_size = num_out * num_in + num_out

    def ref_fc(x, param):
        bsz = x.shape[0]
        w = param[:, : num_out * num_in].reshape(bsz, num_out, num_in)
        b = param[:, num_out * num_in :].reshape(bsz, num_out)
        return jnp.einsum("ab,acb->ac", x, w) + b

    key = jax.random.PRNGKey(0)
    # (32, tb=8): multi-step grid with aligned batch.  (10, tb=8): ragged tail path.
    for batch, max_tb in ((32, 8), (10, 8)):
        key, kx, kp = jax.random.split(key, 3)
        x = jax.random.normal(kx, (batch, num_in), dtype=jnp.float32)
        param = jax.random.normal(kp, (batch, param_size), dtype=jnp.float32)

        out = jax.block_until_ready(
            fc_layer(x, param, num_in, num_out, max_tb=max_tb)
        )
        ref = ref_fc(x, param)

        assert out.shape == (batch, num_out)
        assert jnp.allclose(out, ref, atol=1e-5, rtol=1e-5), (
            f"mismatch for batch={batch}: "
            f"max abs err {jnp.max(jnp.abs(out - ref))}"
        )

    print("KERNEL_OK")
</pallas_src>

<mosaic_0001>
module attributes {stable_mosaic.version = 11 : i64} {
  func.func @_fc_kernel(%arg0: i32, %arg1: memref<8x16xf32, #tpu.memory_space<vmem>>, %arg2: memref<8x136xf32, #tpu.memory_space<vmem>>, %arg3: memref<8x8xf32, #tpu.memory_space<vmem>>) attributes {dimension_semantics = [#tpu.dimension_semantics<parallel>], iteration_bounds = array<i64: 4>, scalar_prefetch = 0 : i64, scratch_operands = 0 : i64, tpu.core_type = #tpu.core_type<tc>, window_params = [{transform_indices = @transform_0, window_bounds = array<i64: 8, 16>}, {transform_indices = @transform_1, window_bounds = array<i64: 8, 136>}, {transform_indices = @transform_2, window_bounds = array<i64: 8, 8>}]} {
    %c0 = arith.constant 0 : index
    %c0_0 = arith.constant 0 : index
    %0 = vector.load %arg1[%c0, %c0_0] : memref<8x16xf32, #tpu.memory_space<vmem>>, vector<8x16xf32>
    %c0_1 = arith.constant 0 : index
    %c0_2 = arith.constant 0 : index
    %1 = vector.load %arg2[%c0_1, %c0_2] : memref<8x136xf32, #tpu.memory_space<vmem>>, vector<8x128xf32>
    %c0_3 = arith.constant 0 : index
    %c128 = arith.constant 128 : index
    %2 = vector.load %arg2[%c0_3, %c128] : memref<8x136xf32, #tpu.memory_space<vmem>>, vector<8x8xf32>
    %3 = vector.shape_cast %1 : vector<8x128xf32> to vector<8x8x16xf32>
    %4 = vector.shape_cast %0 : vector<8x16xf32> to vector<8x1x16xf32>
    %5 = vector.broadcast %4 : vector<8x1x16xf32> to vector<8x8x16xf32>
    %6 = arith.mulf %5, %3 : vector<8x8x16xf32>
    %cst = arith.constant dense<0.000000e+00> : vector<8x8xf32>
    %7 = vector.multi_reduction <add>, %6, %cst [2] : vector<8x8x16xf32> to vector<8x8xf32>
    %8 = arith.addf %7, %2 : vector<8x8xf32>
    %c0_4 = arith.constant 0 : index
    %c0_5 = arith.constant 0 : index
    %9 = vector.load %arg3[%c0_4, %c0_5] : memref<8x8xf32, #tpu.memory_space<vmem>>, vector<8x8xf32>
    tpu.vector_store %arg3[%c0_4, %c0_5], %8 {strides = array<i32>} : memref<8x8xf32, #tpu.memory_space<vmem>>, vector<8x8xf32>,
    return
  }
  func.func @transform_0(%arg0: i32) -> (i32, i32) {
    %c0_i32 = arith.constant 0 : i32
    %c0_i32_0 = arith.constant 0 : i32
    return %arg0, %c0_i32 : i32, i32
  }
  func.func @transform_1(%arg0: i32) -> (i32, i32) {
    %c0_i32 = arith.constant 0 : i32
    %c0_i32_0 = arith.constant 0 : i32
    return %arg0, %c0_i32 : i32, i32
  }
  func.func @transform_2(%arg0: i32) -> (i32, i32) {
    %c0_i32 = arith.constant 0 : i32
    %c0_i32_0 = arith.constant 0 : i32
    return %arg0, %c0_i32 : i32, i32
  }
}

</mosaic_0001>

<llo_original>
// kernel: tpu_custom_call.1
$region0: #{tpu_custom_call.1}
  #allocation0 [shape = 'u32[]', space=smem, size = 0x4, offset = 0x4, fixed_abs, tag = 'smem constant byte address 0x4 - core index']
  #allocation1 [shape = 'u32[144,128]{1,0:T(1,128)}', space=vmem, size = 0x12000, scoped, tag = 'internal scratch']
  %s0 = inlined_call_operand.vmem [shape: f32[32,16], index: 0, kind: input, shape index: {}]
  %s1 = inlined_call_operand.hbm [shape: f32[32,136], index: 1, kind: input, shape index: {}]
  %s2 = inlined_call_operand.vmem [shape: f32[32,8], index: 2, kind: output, shape index: {}]
  %s3 = sld [smem:[#allocation0]]
  $region45: #{tpu_custom_call.1} parent=0
    _
  %s5 = ssub.s32 1, %s3
  %s6 = scalar_select 0, %s5, %s3
  $region1: #{tpu_custom_call.1} parent=0
    #allocation2 [shape = 'u8[16384]{0}', space=vmem, size = 0x4000, scoped, tag = 'input window, operand 1']
    #allocation3 [shape = 's32[2]{0}', space=sflag, size = 0x8, scoped, tag = 'scoped memory for tpu_custom_call.1']
    %7 = vsyncpa [#allocation3], 0
    %s8 = scalar_lea.sflag [#allocation3], 1
    %9 = vsyncpa %s8, 0
    loop: start=0, step=1, limit=6
    $region2: #{tpu_custom_call.1} parent=1 // loop_pre_header
      _
    $region3: #{tpu_custom_call.1} parent=1 // loop_header
      %s11 = sphi 0, %s15
      %p12 = scmp.ge.s32.totalorder %s11, 6
      %s21 = sphi 0, %s23
      %s24 = sphi 0, %s21
      %s25 = sphi 0, %s24
      %s41 = sphi 0, %s25
      %s47 = sphi 0, %s49
      %s50 = sphi 0, %s47
      %s51 = sphi 0, %s50
      %s67 = sphi 0, %s51
      %s73 = sphi 0, %s75
      %s76 = sphi 0, %s73
      %s77 = sphi 0, %s76
      %s93 = sphi 0, %s77
    $region4: #{tpu_custom_call.1} parent=1 // loop_header_branch
      %14 = sbr.rel (%p12) target = $region8
    $region5: #{tpu_custom_call.1} parent=1 // loop_body
      %s16 = ssub.s32 %s11, 1
      %s17 = ssub.s32 %s11, 2
      %s18 = sadd.s32 %s11, 1
      %s19 = ssub.s32 %s11, %s18
      %p20 = scmp.eq.s32.totalorder %s19, 0
      %s22 = sadd.s32 %s21, 1
      %s23 = scalar_select %p20, %s21, %s22
      %p26 = pneg %p20
      %p27 = scmp.eq.s32.totalorder %s11, 3
      %p28 = por %p26, %p27
      %p29 = scmp.ne.s32.totalorder %s21, %s24
      %p30 = scmp.eq.s32.totalorder %s11, 0
      %p31 = por %p29, %p30
      %p32 = scmp.ne.s32.totalorder %s21, %s24
      %p33 = scmp.eq.s32.totalorder %s16, 3
      %p34 = por %p32, %p33
      %p35 = scmp.ne.s32.totalorder %s24, %s25
      %p36 = scmp.eq.s32.totalorder %s16, 0
      %p37 = por %p35, %p36
      %p38 = scmp.ne.s32.totalorder %s24, %s25
      %p39 = scmp.eq.s32.totalorder %s17, 3
      %p40 = por %p38, %p39
      %p42 = scmp.ne.s32.totalorder %s25, %s41
      %p43 = scmp.eq.s32.totalorder %s17, 0
      %p44 = por %p42, %p43
      %s45 = ssub.s32 %s11, %s18
      %p46 = scmp.eq.s32.totalorder %s45, 0
      %s48 = sadd.s32 %s47, 1
      %s49 = scalar_select %p46, %s47, %s48
      %p52 = pneg %p46
      %p53 = scmp.eq.s32.totalorder %s11, 3
      %p54 = por %p52, %p53
      %p55 = scmp.ne.s32.totalorder %s47, %s50
      %p56 = scmp.eq.s32.totalorder %s11, 0
      %p57 = por %p55, %p56
      %p58 = scmp.ne.s32.totalorder %s47, %s50
      %p59 = scmp.eq.s32.totalorder %s16, 3
      %p60 = por %p58, %p59
      %p61 = scmp.ne.s32.totalorder %s50, %s51
      %p62 = scmp.eq.s32.totalorder %s16, 0
      %p63 = por %p61, %p62
      %p64 = scmp.ne.s32.totalorder %s50, %s51
      %p65 = scmp.eq.s32.totalorder %s17, 3
      %p66 = por %p64, %p65
      %p68 = scmp.ne.s32.totalorder %s51, %s67
      %p69 = scmp.eq.s32.totalorder %s17, 0
      %p70 = por %p68, %p69
      %s71 = ssub.s32 %s11, %s18
      %p72 = scmp.eq.s32.totalorder %s71, 0
      %s74 = sadd.s32 %s73, 1
      %s75 = scalar_select %p72, %s73, %s74
      %p78 = pneg %p72
      %p79 = scmp.eq.s32.totalorder %s11, 3
      %p80 = por %p78, %p79
      %p81 = scmp.ne.s32.totalorder %s73, %s76
      %p82 = scmp.eq.s32.totalorder %s11, 0
      %p83 = por %p81, %p82
      %p84 = scmp.ne.s32.totalorder %s73, %s76
      %p85 = scmp.eq.s32.totalorder %s16, 3
      %p86 = por %p84, %p85
      %p87 = scmp.ne.s32.totalorder %s76, %s77
      %p88 = scmp.eq.s32.totalorder %s16, 0
      %p89 = por %p87, %p88
      %p90 = scmp.ne.s32.totalorder %s76, %s77
      %p91 = scmp.eq.s32.totalorder %s17, 3
      %p92 = por %p90, %p91
      %p94 = scmp.ne.s32.totalorder %s77, %s93
      %p95 = scmp.eq.s32.totalorder %s17, 0
      %p96 = por %p94, %p95
      %p97 = scmp.le.s32.totalorder 1, %s11
      %p98 = scmp.lt.s32.totalorder %s11, 5
      %p99 = pnand %p97, %p98
      %p100 = pneg %p99
      // Predicated region
      $region9: #{tpu_custom_call.1} parent=5 // pred_check
        _
      $region10: #{tpu_custom_call.1} parent=5 // pred_check_branch
        %102 = sbr.rel (%p99) target = $region12
      $region11: #{tpu_custom_call.1} parent=5 // pred_region
        %s103 = ssub.s32 %s11, 1
      $region12: #{tpu_custom_call.1} parent=5 // pred_fallthru
        _
      %p104 = scmp.lt.s32.totalorder %s11, 4
      // Predicated region
      $region13: #{tpu_custom_call.1} parent=5 // pred_check
        %p105 = pneg %p104
      $region14: #{tpu_custom_call.1} parent=5 // pred_check_branch
        %107 = sbr.rel (%p105) target = $region16
      $region15: #{tpu_custom_call.1} parent=5 // pred_region
        // Predicated region
        $region17: #{tpu_custom_call.1} parent=15 // pred_check
          %p108 = pneg %p31
        $region18: #{tpu_custom_call.1} parent=15 // pred_check_branch
          %110 = sbr.rel (%p108) target = $region20
        $region19: #{tpu_custom_call.1} parent=15 // pred_region
          %p111 = scmp.lt.s32.totalorder %s11, 3
          %s112 = scalar_select %p111, %s11, 3
          %s113 = smul.addr %s112, 8
          %s114 = scalar_lea.vmem %s0, %s113
        $region20: #{tpu_custom_call.1} parent=15 // pred_fallthru
          _
        // Predicated region
        $region21: #{tpu_custom_call.1} parent=15 // pred_check
          %p115 = pneg %p57
        $region22: #{tpu_custom_call.1} parent=15 // pred_check_branch
          %117 = sbr.rel (%p115) target = $region24
        $region23: #{tpu_custom_call.1} parent=15 // pred_region
          %s118 = sand.u32 %s47, 1
          %s119 = scalar_lea.sflag [#allocation3], %s118
          %s120 = sand.u32 %s47, 1
          %s121 = smul.addr %s120, 16
          %s122 = scalar_lea.vmem [#allocation2], %s121
          %s124 = ssub.s32 256, 256
          %125 = vsyncadd %s119, %s124
          %s126 = smul.addr %s11, 2
          %s127 = smul.addr %s126, 128
          %s128 = scalar_lea.hbm %s1, %s127
          %s130 = sshll.u32 %s122, 4
          %s131 = int_to_ptr.vmem [resolvable:$true] %s130
          %133 = dma.hbm_to_vmem [thread:$0]  %s128, 256, %s131, %s119
        $region24: #{tpu_custom_call.1} parent=15 // pred_fallthru
          _
      $region16: #{tpu_custom_call.1} parent=5 // pred_fallthru
        _
      %p134 = scmp.le.s32.totalorder 1, %s11
      %p135 = scmp.lt.s32.totalorder %s11, 5
      %p136 = pnand %p134, %p135
      %p137 = pneg %p136
      // Predicated region
      $region25: #{tpu_custom_call.1} parent=5 // pred_check
        _
      $region26: #{tpu_custom_call.1} parent=5 // pred_check_branch
        %139 = sbr.rel (%p136) target = $region28
      $region27: #{tpu_custom_call.1} parent=5 // pred_region
        %s140 = ssub.s32 %s11, 1
        %s141 = sand.u32 %s50, 1
        %s142 = scalar_lea.sflag [#allocation3], %s141
        %s143 = sand.u32 %s50, 1
        %s144 = smul.addr %s143, 16
        %s145 = scalar_lea.vmem [#allocation2], %s144
        // Predicated region
        $region29: #{tpu_custom_call.1} parent=27 // pred_check
          %p146 = pneg %p63
        $region30: #{tpu_custom_call.1} parent=27 // pred_check_branch
          %148 = sbr.rel (%p146) target = $region32
        $region31: #{tpu_custom_call.1} parent=27 // pred_region
          %149 = dma.done %s142, 256
        $region32: #{tpu_custom_call.1} parent=27 // pred_fallthru
          _
        %p150 = scmp.lt.s32.totalorder %s16, 3
        %s151 = scalar_select %p150, %s16, 3
        %s152 = smul.addr %s151, 8
        %s153 = scalar_lea.vmem %s0, %s152
        %p154 = pneg %p37
        %p155 = pneg %p34
        %s156 = sand.u32 %s50, 1
        %s157 = scalar_lea.sflag [#allocation3], %s156
        %s158 = sand.u32 %s50, 1
        %s159 = smul.addr %s158, 16
        %s160 = scalar_lea.vmem [#allocation2], %s159
        %p161 = pneg %p63
        %p162 = pneg %p60
        %p163 = pneg %p89
        %p164 = pneg %p86
        %p165 = scmp.lt.s32.totalorder %s16, 3
        %s166 = scalar_select %p165, %s16, 3
        %s167 = smul.addr %s166, 8
        %s168 = scalar_lea.vmem %s2, %s167
        %p169 = scmp.lt.s32.totalorder %s16, 3
        %s170 = scalar_select %p169, %s16, 3
        %s171 = smul.addr %s170, 8
        %s172 = scalar_lea.vmem %s0, %s171
        %p173 = scmp.lt.s32.totalorder %s16, 3
        %s174 = scalar_select %p173, %s16, 3
        %s175 = smul.addr %s174, 8
        %s176 = scalar_lea.vmem %s2, %s175
        %v177 = vld [vmem:[%s172] sm:$0xff]
        %v178 = vld [vmem:[%s145] sm:$0xff]
        %v179 = vld [vmem:[%s145 + $0x8] sm:$0xff]
        %181 = vrot.lane.b32.xlu0 %v178, 112
        %v182 = vpop.permute.xlu0 %181
        %184 = vrot.lane.b32.xlu0 %v178, 96
        %v185 = vpop.permute.xlu0 %184
        %187 = vrot.lane.b32.xlu0 %v178, 80
        %v188 = vpop.permute.xlu0 %187
        %190 = vrot.lane.b32.xlu0 %v178, 64
        %v191 = vpop.permute.xlu0 %190
        %193 = vrot.lane.b32.xlu0 %v178, 48
        %v194 = vpop.permute.xlu0 %193
        %196 = vrot.lane.b32.xlu0 %v178, 32
        %v197 = vpop.permute.xlu0 %196
        %199 = vrot.lane.b32.xlu0 %v178, 16
        %v200 = vpop.permute.xlu0 %199
        %v202 = vcombine.low %v178, %v185
        %v203 = vcombine.high %v178, %v185
        %v205 = vunpack.c.l.s4 1983009808
        %v206 = vunpack.c.0.s8 %v205
        %v207 = vlaneseq
        %v208 = vshrl.u32 %v207, 7
        %v209 = vsub.s32 %v206, %v208
        %v210 = vrot.slane %v202, %v209
        %v212 = vunpack.c.l.s4 1983009808
        %v213 = vunpack.c.0.s8 %v212
        %v214 = vlaneseq
        %v215 = vshrl.u32 %v214, 7
        %v216 = vsub.s32 %v213, %v215
        %v217 = vrot.slane %v203, %v216
        %v218 = vcombine.low %v182, %v188
        %v219 = vcombine.high %v182, %v188
        %v221 = vunpack.c.l.s4 1983009808
        %v222 = vunpack.c.0.s8 %v221
        %v223 = vlaneseq
        %v224 = vshrl.u32 %v223, 7
        %v225 = vsub.s32 %v222, %v224
        %v226 = vrot.slane %v218, %v225
        %v228 = vunpack.c.l.s4 1983009808
        %v229 = vunpack.c.0.s8 %v228
        %v230 = vlaneseq
        %v231 = vshrl.u32 %v230, 7
        %v232 = vsub.s32 %v229, %v231
        %v233 = vrot.slane %v219, %v232
        %v234 = vcombine.low %v191, %v197
        %v235 = vcombine.high %v191, %v197
        %v237 = vunpack.c.l.s4 1983009808
        %v238 = vunpack.c.0.s8 %v237
        %v239 = vlaneseq
        %v240 = vshrl.u32 %v239, 7
        %v241 = vsub.s32 %v238, %v240
        %v242 = vrot.slane %v234, %v241
        %v244 = vunpack.c.l.s4 1983009808
        %v245 = vunpack.c.0.s8 %v244
        %v246 = vlaneseq
        %v247 = vshrl.u32 %v246, 7
        %v248 = vsub.s32 %v245, %v247
        %v249 = vrot.slane %v235, %v248
        %v250 = vcombine.low %v194, %v200
        %v251 = vcombine.high %v194, %v200
        %v253 = vunpack.c.l.s4 1983009808
        %v254 = vunpack.c.0.s8 %v253
        %v255 = vlaneseq
        %v256 = vshrl.u32 %v255, 7
        %v257 = vsub.s32 %v254, %v256
        %v258 = vrot.slane %v250, %v257
        %v260 = vunpack.c.l.s4 1983009808
        %v261 = vunpack.c.0.s8 %v260
        %v262 = vlaneseq
        %v263 = vshrl.u32 %v262, 7
        %v264 = vsub.s32 %v261, %v263
        %v265 = vrot.slane %v251, %v264
        %v266 = vcombine.low %v210, %v226
        %v267 = vcombine.high %v210, %v226
        %v269 = vunpack.c.l.s4 1934713408
        %v270 = vunpack.c.0.s8 %v269
        %v271 = vlaneseq
        %v272 = vshrl.u32 %v271, 7
        %v273 = vsub.s32 %v270, %v272
        %v274 = vrot.slane %v266, %v273
        %v276 = vunpack.c.l.s4 1934713408
        %v277 = vunpack.c.0.s8 %v276
        %v278 = vlaneseq
        %v279 = vshrl.u32 %v278, 7
        %v280 = vsub.s32 %v277, %v279
        %v281 = vrot.slane %v267, %v280
        %v282 = vcombine.low %v217, %v233
        %v283 = vcombine.high %v217, %v233
        %v285 = vunpack.c.l.s4 1934713408
        %v286 = vunpack.c.0.s8 %v285
        %v287 = vlaneseq
        %v288 = vshrl.u32 %v287, 7
        %v289 = vsub.s32 %v286, %v288
        %v290 = vrot.slane %v282, %v289
        %v292 = vunpack.c.l.s4 1934713408
        %v293 = vunpack.c.0.s8 %v292
        %v294 = vlaneseq
        %v295 = vshrl.u32 %v294, 7
        %v296 = vsub.s32 %v293, %v295
        %v297 = vrot.slane %v283, %v296
        %v298 = vcombine.low %v242, %v258
        %v299 = vcombine.high %v242, %v258
        %v301 = vunpack.c.l.s4 1934713408
        %v302 = vunpack.c.0.s8 %v301
        %v303 = vlaneseq
        %v304 = vshrl.u32 %v303, 7
        %v305 = vsub.s32 %v302, %v304
        %v306 = vrot.slane %v298, %v305
        %v308 = vunpack.c.l.s4 1934713408
        %v309 = vunpack.c.0.s8 %v308
        %v310 = vlaneseq
        %v311 = vshrl.u32 %v310, 7
        %v312 = vsub.s32 %v309, %v311
        %v313 = vrot.slane %v299, %v312
        %v314 = vcombine.low %v249, %v265
        %v315 = vcombine.high %v249, %v265
        %v317 = vunpack.c.l.s4 1934713408
        %v318 = vunpack.c.0.s8 %v317
        %v319 = vlaneseq
        %v320 = vshrl.u32 %v319, 7
        %v321 = vsub.s32 %v318, %v320
        %v322 = vrot.slane %v314, %v321
        %v324 = vunpack.c.l.s4 1934713408
        %v325 = vunpack.c.0.s8 %v324
        %v326 = vlaneseq
        %v327 = vshrl.u32 %v326, 7
        %v328 = vsub.s32 %v325, %v327
        %v329 = vrot.slane %v315, %v328
        %v330 = vcombine.low %v274, %v306
        %v331 = vcombine.high %v274, %v306
        %v332 = vcombine.low %v281, %v313
        %v333 = vcombine.high %v281, %v313
        %v334 = vcombine.low %v290, %v322
        %v335 = vcombine.high %v290, %v322
        %v336 = vcombine.low %v297, %v329
        %v337 = vcombine.high %v297, %v329
        %v339 = vcombine.high %v177, %v177
        %v341 = vunpack.c.l.s4 1966171168
        %v342 = vunpack.c.0.s8 %v341
        %v343 = vlaneseq
        %v344 = vshrl.u32 %v343, 7
        %v345 = vsub.s32 %v342, %v344
        %v346 = vrot.slane %v177, %v345
        %v348 = vunpack.c.l.s4 1966171168
        %v349 = vunpack.c.0.s8 %v348
        %v350 = vlaneseq
        %v351 = vshrl.u32 %v350, 7
        %v352 = vsub.s32 %v349, %v351
        %v353 = vrot.slane %v339, %v352
        %v354 = vcombine.high %v346, %v346
        %v355 = vcombine.high %v353, %v353
        %v357 = vunpack.c.l.s4 1966171168
        %v358 = vunpack.c.0.s8 %v357
        %v359 = vlaneseq
        %v360 = vshrl.u32 %v359, 7
        %v361 = vsub.s32 %v358, %v360
        %v362 = vrot.slane %v346, %v361
        %v364 = vunpack.c.l.s4 1966171168
        %v365 = vunpack.c.0.s8 %v364
        %v366 = vlaneseq
        %v367 = vshrl.u32 %v366, 7
        %v368 = vsub.s32 %v365, %v367
        %v369 = vrot.slane %v353, %v368
        %v371 = vunpack.c.l.s4 1966171168
        %v372 = vunpack.c.0.s8 %v371
        %v373 = vlaneseq
        %v374 = vshrl.u32 %v373, 7
        %v375 = vsub.s32 %v372, %v374
        %v376 = vrot.slane %v354, %v375
        %v378 = vunpack.c.l.s4 1966171168
        %v379 = vunpack.c.0.s8 %v378
        %v380 = vlaneseq
        %v381 = vshrl.u32 %v380, 7
        %v382 = vsub.s32 %v379, %v381
        %v383 = vrot.slane %v355, %v382
        %v384 = vcombine.high %v362, %v362
        %v385 = vcombine.high %v369, %v369
        %v386 = vcombine.high %v376, %v376
        %v387 = vcombine.high %v383, %v383
        %v388 = vlaneseq
        %v389 = vshrl.u32 %v388, 7
        %v390 = vsub.s32 0, %v389
        %v391 = vrot.slane %v362, %v390
        %v392 = vlaneseq
        %v393 = vshrl.u32 %v392, 7
        %v394 = vsub.s32 0, %v393
        %v395 = vrot.slane %v376, %v394
        %v396 = vlaneseq
        %v397 = vshrl.u32 %v396, 7
        %v398 = vsub.s32 0, %v397
        %v399 = vrot.slane %v384, %v398
        %v400 = vlaneseq
        %v401 = vshrl.u32 %v400, 7
        %v402 = vsub.s32 0, %v401
        %v403 = vrot.slane %v386, %v402
        %v404 = vlaneseq
        %v405 = vshrl.u32 %v404, 7
        %v406 = vsub.s32 0, %v405
        %v407 = vrot.slane %v369, %v406
        %v408 = vlaneseq
        %v409 = vshrl.u32 %v408, 7
        %v410 = vsub.s32 0, %v409
        %v411 = vrot.slane %v383, %v410
        %v412 = vlaneseq
        %v413 = vshrl.u32 %v412, 7
        %v414 = vsub.s32 0, %v413
        %v415 = vrot.slane %v385, %v414
        %v416 = vlaneseq
        %v417 = vshrl.u32 %v416, 7
        %v418 = vsub.s32 0, %v417
        %v419 = vrot.slane %v387, %v418
        %v428 = vmul.f32 %v391, %v330
        %v429 = vmul.f32 %v395, %v331
        %v430 = vmul.f32 %v399, %v332
        %v431 = vmul.f32 %v403, %v333
        %v432 = vmul.f32 %v407, %v334
        %v433 = vmul.f32 %v411, %v335
        %v434 = vmul.f32 %v415, %v336
        %v435 = vmul.f32 %v419, %v337
        %vm436 = vcmask 130048
        %v437 = vsel %vm436, %v428, 0.0
        %438 = vadd.xlane.f32.xlu0 %v437
        %v439 = vpop.xlane.xlu0 %438
        %v440 = vsel %vm436, %v429, 0.0
        %441 = vadd.xlane.f32.xlu0 %v440
        %v442 = vpop.xlane.xlu0 %441
        %v443 = vsel %vm436, %v430, 0.0
        %444 = vadd.xlane.f32.xlu0 %v443
        %v445 = vpop.xlane.xlu0 %444
        %v446 = vsel %vm436, %v431, 0.0
        %447 = vadd.xlane.f32.xlu0 %v446
        %v448 = vpop.xlane.xlu0 %447
        %v449 = vsel %vm436, %v432, 0.0
        %450 = vadd.xlane.f32.xlu0 %v449
        %v451 = vpop.xlane.xlu0 %450
        %v452 = vsel %vm436, %v433, 0.0
        %453 = vadd.xlane.f32.xlu0 %v452
        %v454 = vpop.xlane.xlu0 %453
        %v455 = vsel %vm436, %v434, 0.0
        %456 = vadd.xlane.f32.xlu0 %v455
        %v457 = vpop.xlane.xlu0 %456
        %v458 = vsel %vm436, %v435, 0.0
        %459 = vadd.xlane.f32.xlu0 %v458
        %v460 = vpop.xlane.xlu0 %459
        %v462 = vlaneseq
        %v463 = vshrl.u32 %v462, 7
        %v464 = vsub.s32 0, %v463
        %v465 = vrot.slane %v179, %v464
        %467 = vbcast.lane.b32.xlu0 %v465, 256
        %v468 = vpop.permute.xlu0 %467
        %v469 = vlaneseq
        %v470 = vshrl.u32 %v469, 7
        %v471 = vsub.s32 1, %v470
        %v472 = vrot.slane %v179, %v471
        %474 = vbcast.lane.b32.xlu0 %v472, 256
        %v475 = vpop.permute.xlu0 %474
        %v476 = vlaneseq
        %v477 = vshrl.u32 %v476, 7
        %v478 = vsub.s32 2, %v477
        %v479 = vrot.slane %v179, %v478
        %481 = vbcast.lane.b32.xlu0 %v479, 256
        %v482 = vpop.permute.xlu0 %481
        %v483 = vlaneseq
        %v484 = vshrl.u32 %v483, 7
        %v485 = vsub.s32 3, %v484
        %v486 = vrot.slane %v179, %v485
        %488 = vbcast.lane.b32.xlu0 %v486, 256
        %v489 = vpop.permute.xlu0 %488
        %v490 = vlaneseq
        %v491 = vshrl.u32 %v490, 7
        %v492 = vsub.s32 4, %v491
        %v493 = vrot.slane %v179, %v492
        %495 = vbcast.lane.b32.xlu0 %v493, 256
        %v496 = vpop.permute.xlu0 %495
        %v497 = vlaneseq
        %v498 = vshrl.u32 %v497, 7
        %v499 = vsub.s32 5, %v498
        %v500 = vrot.slane %v179, %v499
        %502 = vbcast.lane.b32.xlu0 %v500, 256
        %v503 = vpop.permute.xlu0 %502
        %v504 = vlaneseq
        %v505 = vshrl.u32 %v504, 7
        %v506 = vsub.s32 6, %v505
        %v507 = vrot.slane %v179, %v506
        %509 = vbcast.lane.b32.xlu0 %v507, 256
        %v510 = vpop.permute.xlu0 %509
        %v511 = vlaneseq
        %v512 = vshrl.u32 %v511, 7
        %v513 = vsub.s32 7, %v512
        %v514 = vrot.slane %v179, %v513
        %516 = vbcast.lane.b32.xlu0 %v514, 256
        %v517 = vpop.permute.xlu0 %516
        %v526 = vadd.f32 %v439, %v468
        %v527 = vadd.f32 %v442, %v475
        %v528 = vadd.f32 %v445, %v482
        %v529 = vadd.f32 %v448, %v489
        %v530 = vadd.f32 %v451, %v496
        %v531 = vadd.f32 %v454, %v503
        %v532 = vadd.f32 %v457, %v510
        %v533 = vadd.f32 %v460, %v517
        %542 = vset.pattern.permute.xlu0 0
        %543 = vperm.xlu0 %542, %v526
        %v544 = vpop.permute.xlu0 %543
        %545 = vset.pattern.permute.xlu0 0
        %546 = vperm.xlu0 %545, %v527
        %v547 = vpop.permute.xlu0 %546
        %548 = vset.pattern.permute.xlu0 0
        %549 = vperm.xlu0 %548, %v528
        %v550 = vpop.permute.xlu0 %549
        %551 = vset.pattern.permute.xlu0 0
        %552 = vperm.xlu0 %551, %v529
        %v553 = vpop.permute.xlu0 %552
        %554 = vset.pattern.permute.xlu0 0
        %555 = vperm.xlu0 %554, %v530
        %v556 = vpop.permute.xlu0 %555
        %557 = vset.pattern.permute.xlu0 0
        %558 = vperm.xlu0 %557, %v531
        %v559 = vpop.permute.xlu0 %558
        %560 = vset.pattern.permute.xlu0 0
        %561 = vperm.xlu0 %560, %v532
        %v562 = vpop.permute.xlu0 %561
        %563 = vset.pattern.permute.xlu0 0
        %564 = vperm.xlu0 %563, %v533
        %v565 = vpop.permute.xlu0 %564
        %v566 = vlaneseq
        %v567 = vand.u32 %v566, 127
        %v568 = vlaneseq
        %v569 = vshrl.u32 %v568, 7
        %v570 = vsub.s32 %v567, %v569
        %v571 = vrot.slane %v544, %v570
        %v572 = vlaneseq
        %v573 = vshrl.u32 %v572, 7
        %v574 = vsub.s32 %v567, %v573
        %v575 = vrot.slane %v547, %v574
        %v576 = vlaneseq
        %v577 = vshrl.u32 %v576, 7
        %v578 = vsub.s32 %v567, %v577
        %v579 = vrot.slane %v550, %v578
        %v580 = vlaneseq
        %v581 = vshrl.u32 %v580, 7
        %v582 = vsub.s32 %v567, %v581
        %v583 = vrot.slane %v553, %v582
        %v584 = vlaneseq
        %v585 = vshrl.u32 %v584, 7
        %v586 = vsub.s32 %v567, %v585
        %v587 = vrot.slane %v556, %v586
        %v588 = vlaneseq
        %v589 = vshrl.u32 %v588, 7
        %v590 = vsub.s32 %v567, %v589
        %v591 = vrot.slane %v559, %v590
        %v592 = vlaneseq
        %v593 = vshrl.u32 %v592, 7
        %v594 = vsub.s32 %v567, %v593
        %v595 = vrot.slane %v562, %v594
        %v596 = vlaneseq
        %v597 = vshrl.u32 %v596, 7
        %v598 = vsub.s32 %v567, %v597
        %v599 = vrot.slane %v565, %v598
        %vm600 = vcmask 1041409
        %v601 = vsel %vm600, %v575, %v571
        %vm602 = vcmask 1042434
        %v603 = vsel %vm602, %v579, %v601
        %vm604 = vcmask 1043459
        %v605 = vsel %vm604, %v583, %v603
        %vm606 = vcmask 1044484
        %v607 = vsel %vm606, %v587, %v605
        %vm608 = vcmask 1045509
        %v609 = vsel %vm608, %v591, %v607
        %vm610 = vcmask 1046534
        %v611 = vsel %vm610, %v595, %v609
        %vm612 = vcmask 1047559
        %v613 = vsel %vm612, %v599, %v611
        %vm615 = vcmask 64512
        %616 = vst.msk [vmem:[%s176] sm:$0xff] %vm615, %v613
        %p617 = scmp.lt.s32.totalorder %s16, 3
        %s618 = scalar_select %p617, %s16, 3
        %s619 = smul.addr %s618, 8
        %s620 = scalar_lea.vmem %s2, %s619
        // Predicated region
        $region33: #{tpu_custom_call.1} parent=27 // pred_check
          %p621 = pneg %p86
        $region34: #{tpu_custom_call.1} parent=27 // pred_check_branch
          %623 = sbr.rel (%p621) target = $region36
        $region35: #{tpu_custom_call.1} parent=27 // pred_region
          _
        $region36: #{tpu_custom_call.1} parent=27 // pred_fallthru
          _
      $region28: #{tpu_custom_call.1} parent=5 // pred_fallthru
        _
      %p624 = scmp.le.s32.totalorder 2, %s11
      // Predicated region
      $region37: #{tpu_custom_call.1} parent=5 // pred_check
        %p625 = pneg %p624
      $region38: #{tpu_custom_call.1} parent=5 // pred_check_branch
        %627 = sbr.rel (%p625) target = $region40
      $region39: #{tpu_custom_call.1} parent=5 // pred_region
        %s628 = ssub.s32 %s11, 2
        // Predicated region
        $region41: #{tpu_custom_call.1} parent=39 // pred_check
          %p629 = pneg %p92
        $region42: #{tpu_custom_call.1} parent=39 // pred_check_branch
          %631 = sbr.rel (%p629) target = $region44
        $region43: #{tpu_custom_call.1} parent=39 // pred_region
          %p632 = scmp.lt.s32.totalorder %s17, 3
          %s633 = scalar_select %p632, %s17, 3
          %s634 = smul.addr %s633, 8
          %s635 = scalar_lea.vmem %s2, %s634
        $region44: #{tpu_custom_call.1} parent=39 // pred_fallthru
          _
      $region40: #{tpu_custom_call.1} parent=5 // pred_fallthru
        _
    $region6: #{tpu_custom_call.1} parent=1 // loop_footer
      %s15 = sadd.s32 1, %s11
    $region7: #{tpu_custom_call.1} parent=1 // loop_footer_branch
      %10 = sbr.rel target = $region3
    $region8: #{tpu_custom_call.1} parent=1 // loop_exit
      _
    %636 = vsyncpa [#allocation3], 1
    %s637 = scalar_lea.sflag [#allocation3], 1
    %638 = vsyncpa %s637, 1

</llo_original>
